<compile_context>
chip_gen: v7x
topology: tpu7x:2x2x1
jax: 0.10.0
libtpu: 0.0.40
codegen_flags: <defaults>
</compile_context>

<pallas_src>
import jax
import jax.numpy as jnp
from jax.experimental import pallas as pl
from jax.experimental.pallas import tpu as pltpu

BN_EPS = 1e-5

# Row indices inside the packed (8, max(nh, cp)) vector slab.
_ROW_G1, _ROW_BT1, _ROW_G2, _ROW_BT2, _ROW_B3 = 0, 1, 2, 3, 4


def _prednet_kernel(x_ref, w1_ref, w2_ref, w3_ref, vec_ref, out_ref):
    B = x_ref.shape[0]
    nh = w1_ref.shape[1]
    cp = out_ref.shape[-1]            # lane-dense padded class dim
    inv_b = 1.0 / B

    g1 = vec_ref[_ROW_G1:_ROW_G1 + 1, :nh]
    bt1 = vec_ref[_ROW_BT1:_ROW_BT1 + 1, :nh]
    g2 = vec_ref[_ROW_G2:_ROW_G2 + 1, :nh]
    bt2 = vec_ref[_ROW_BT2:_ROW_BT2 + 1, :nh]
    b3 = vec_ref[_ROW_B3:_ROW_B3 + 1, :cp]

    # ---- Linear(nz, nh) (bias cancelled by BN) + fused BN + ReLU ----
    x = x_ref[...].astype(jnp.bfloat16)
    h = jnp.dot(x, w1_ref[...], preferred_element_type=jnp.float32)
    s1 = jnp.sum(h, axis=0, keepdims=True)           # independent XLU reductions
    q1 = jnp.sum(h * h, axis=0, keepdims=True)
    m1 = s1 * inv_b
    v1 = q1 * inv_b - m1 * m1                         # biased variance, E[h^2]-mean^2
    scale1 = g1 * jax.lax.rsqrt(v1 + BN_EPS)          # (1, nh), EUP rsqrt
    shift1 = bt1 - m1 * scale1                        # mean folded into the shift
    h = jnp.maximum(h * scale1 + shift1, 0.0)         # single FMA + max pass

    # ---- Linear(nh, nh) (bias cancelled by BN) + fused BN + ReLU ----
    h2 = jnp.dot(h.astype(jnp.bfloat16), w2_ref[...],
                 preferred_element_type=jnp.float32)
    s2 = jnp.sum(h2, axis=0, keepdims=True)
    q2 = jnp.sum(h2 * h2, axis=0, keepdims=True)
    m2 = s2 * inv_b
    v2 = q2 * inv_b - m2 * m2
    scale2 = g2 * jax.lax.rsqrt(v2 + BN_EPS)
    shift2 = bt2 - m2 * scale2
    h2 = jnp.maximum(h2 * scale2 + shift2, 0.0)

    # ---- Linear(nh, class_num) (lane-dense padded output) ----
    out = jnp.dot(h2.astype(jnp.bfloat16), w3_ref[...],
                  preferred_element_type=jnp.float32) + b3
    out_ref[...] = out.astype(out_ref.dtype)


def pack_params(params):
    """One-time packing: pad w1's K and w3/b3's class dim to lane-dense multiples of
    128, cast MXU weights to bf16, and stack all (1, nh)/(1, cp) row vectors
    (g1, bt1, g2, bt2, b3) into a single f32 (8, max(nh, cp)) slab."""
    nz, nh = params["w1"].shape
    class_num = params["w3"].shape[1]
    cp = ((class_num + 127) // 128) * 128              # lane-dense padded class dim
    nzp = ((nz + 127) // 128) * 128                    # MXU-aligned K for the 1st GEMM
    vw = max(nh, cp)                                   # slab width covers the b3 row

    w1p = jnp.zeros((nzp, nh), jnp.float32).at[:nz, :].set(params["w1"])
    w3p = jnp.zeros((nh, cp), jnp.float32).at[:, :class_num].set(params["w3"])

    vecs = jnp.zeros((8, vw), jnp.float32)
    vecs = vecs.at[_ROW_G1, :nh].set(params["g1"][0])
    vecs = vecs.at[_ROW_BT1, :nh].set(params["bt1"][0])
    vecs = vecs.at[_ROW_G2, :nh].set(params["g2"][0])
    vecs = vecs.at[_ROW_BT2, :nh].set(params["bt2"][0])
    vecs = vecs.at[_ROW_B3, :class_num].set(params["b3"][0])

    return {
        "w1": w1p.astype(jnp.bfloat16),
        "w2": params["w2"].astype(jnp.bfloat16),
        "w3": w3p.astype(jnp.bfloat16),
        "vecs": vecs,                                  # BN params / b3 stay f32
        "nz": nz, "nzp": nzp, "nh": nh, "class_num": class_num, "cp": cp,
    }


def prednet_forward(x, packed):
    """x: [N, B, nz] (N independent minibatch slabs; BN stats are per slab) or [B, nz].
    Returns logits [N, B, class_num] (or [B, class_num])."""
    squeeze = (x.ndim == 2)
    if squeeze:
        x = x[None]
    N, B, nz = x.shape
    nzp, cp, class_num = packed["nzp"], packed["cp"], packed["class_num"]

    if nzp != nz:                                      # lane-dense x tile (cheap pad)
        x = jnp.pad(x, ((0, 0), (0, 0), (0, nzp - nz)))

    w1, w2, w3, vecs = packed["w1"], packed["w2"], packed["w3"], packed["vecs"]

    out_padded = pl.pallas_call(
        _prednet_kernel,
        out_shape=jax.ShapeDtypeStruct((N, B, cp), jnp.float32),
        grid_spec=pltpu.PrefetchScalarGridSpec(
            num_scalar_prefetch=0,
            grid=(N,),
            in_specs=[
                # Per-slab input block; weights/vecs constant -> VMEM-resident.
                pl.BlockSpec((None, B, nzp), lambda n: (n, 0, 0)),
                pl.BlockSpec(w1.shape, lambda n: (0, 0)),
                pl.BlockSpec(w2.shape, lambda n: (0, 0)),
                pl.BlockSpec(w3.shape, lambda n: (0, 0)),
                pl.BlockSpec(vecs.shape, lambda n: (0, 0)),
            ],
            out_specs=pl.BlockSpec((None, B, cp), lambda n: (n, 0, 0)),
        ),
        compiler_params=pltpu.CompilerParams(
            dimension_semantics=("parallel",),          # shards slabs on v7x's 2 TCs
            vmem_limit_bytes=32 * 1024 * 1024,          # guardrail; usage is <1 MiB
        ),
    )(x, w1, w2, w3, vecs)

    out = out_padded[..., :class_num]
    return out[0] if squeeze else out


def init_params(key, nz, nh, class_num):
    """Deterministic synthetic parameters (same shapes as the PyTorch module)."""
    ks = jax.random.split(key, 6)

    def lin(kw, kb, fan_in, fan_out):
        bound = 1.0 / jnp.sqrt(float(fan_in))
        w = jax.random.uniform(kw, (fan_in, fan_out), jnp.float32, -bound, bound)
        b = jax.random.uniform(kb, (1, fan_out), jnp.float32, -bound, bound)
        return w, b

    w1, b1 = lin(ks[0], ks[1], nz, nh)
    w2, b2 = lin(ks[2], ks[3], nh, nh)
    w3, b3 = lin(ks[4], ks[5], nh, class_num)

    return {
        "w1": w1, "b1": b1,
        "g1": jnp.ones((1, nh), jnp.float32), "bt1": jnp.zeros((1, nh), jnp.float32),
        "w2": w2, "b2": b2,
        "g2": jnp.ones((1, nh), jnp.float32), "bt2": jnp.zeros((1, nh), jnp.float32),
        "w3": w3, "b3": b3,
    }


def prednet_reference(x, params):
    """Pure-JAX f32 reference matching the PyTorch module (training-mode BN, includes
    b1/b2 which BN mean-subtraction cancels). Applied per slab."""
    def one(xb):
        h = xb @ params["w1"] + params["b1"]
        m = h.mean(0, keepdims=True)
        v = ((h - m) ** 2).mean(0, keepdims=True)
        h = (h - m) / jnp.sqrt(v + BN_EPS) * params["g1"] + params["bt1"]
        h = jnp.maximum(h, 0.0)
        h = h @ params["w2"] + params["b2"]
        m = h.mean(0, keepdims=True)
        v = ((h - m) ** 2).mean(0, keepdims=True)
        h = (h - m) / jnp.sqrt(v + BN_EPS) * params["g2"] + params["bt2"]
        h = jnp.maximum(h, 0.0)
        return h @ params["w3"] + params["b3"]

    return jax.vmap(one)(x) if x.ndim == 3 else one(x)


if __name__ == "__main__":
    key = jax.random.PRNGKey(0)
    k_x, k_p = jax.random.split(key)

    # opt.nz = 32, opt.class_num = 10; N=4 independent minibatch slabs of B=8.
    N, B, nz, nh, class_num = 4, 8, 32, 256, 10
    x = jax.random.normal(k_x, (N, B, nz), jnp.float32)
    params = init_params(k_p, nz, nh, class_num)
    packed = pack_params(params)

    out = jax.block_until_ready(prednet_forward(x, packed))
    ref = prednet_reference(x, params)

    assert out.shape == (N, B, class_num)
    # Tolerance reflects bf16 MXU weights/activations (the default-precision f32 path
    # feeds the MXU bf16-truncated operands anyway); typical error is far smaller.
    err = float(jnp.max(jnp.abs(out - ref)))
    assert jnp.allclose(out, ref, atol=5e-2, rtol=5e-2), f"mismatch vs reference: {err}"

    print("KERNEL_OK")
</pallas_src>

<mosaic_0001>
module attributes {stable_mosaic.version = 11 : i64} {
  func.func @_prednet_kernel(%arg0: i32, %arg1: memref<1x8x128xf32, #tpu.memory_space<vmem>>, %arg2: memref<128x256xbf16, #tpu.memory_space<vmem>>, %arg3: memref<256x256xbf16, #tpu.memory_space<vmem>>, %arg4: memref<256x128xbf16, #tpu.memory_space<vmem>>, %arg5: memref<8x256xf32, #tpu.memory_space<vmem>>, %arg6: memref<1x8x128xf32, #tpu.memory_space<vmem>>) attributes {dimension_semantics = [#tpu.dimension_semantics<parallel>], iteration_bounds = array<i64: 4>, scalar_prefetch = 0 : i64, scratch_operands = 0 : i64, tpu.core_type = #tpu.core_type<tc>, window_params = [{transform_indices = @transform_0, window_bounds = array<i64: 1, 8, 128>}, {pipeline_mode = #tpu.pipeline_mode<synchronous>, transform_indices = @transform_1, window_bounds = array<i64: 128, 256>}, {pipeline_mode = #tpu.pipeline_mode<synchronous>, transform_indices = @transform_2, window_bounds = array<i64: 256, 256>}, {pipeline_mode = #tpu.pipeline_mode<synchronous>, transform_indices = @transform_3, window_bounds = array<i64: 256, 128>}, {pipeline_mode = #tpu.pipeline_mode<synchronous>, transform_indices = @transform_4, window_bounds = array<i64: 8, 256>}, {transform_indices = @transform_5, window_bounds = array<i64: 1, 8, 128>}]} {
    %c0 = arith.constant 0 : index
    %c0_0 = arith.constant 0 : index
    %0 = vector.load %arg5[%c0, %c0_0] : memref<8x256xf32, #tpu.memory_space<vmem>>, vector<1x256xf32>
    %c1 = arith.constant 1 : index
    %c0_1 = arith.constant 0 : index
    %1 = vector.load %arg5[%c1, %c0_1] : memref<8x256xf32, #tpu.memory_space<vmem>>, vector<1x256xf32>
    %c2 = arith.constant 2 : index
    %c0_2 = arith.constant 0 : index
    %2 = vector.load %arg5[%c2, %c0_2] : memref<8x256xf32, #tpu.memory_space<vmem>>, vector<1x256xf32>
    %c3 = arith.constant 3 : index
    %c0_3 = arith.constant 0 : index
    %3 = vector.load %arg5[%c3, %c0_3] : memref<8x256xf32, #tpu.memory_space<vmem>>, vector<1x256xf32>
    %c4 = arith.constant 4 : index
    %c0_4 = arith.constant 0 : index
    %4 = vector.load %arg5[%c4, %c0_4] : memref<8x256xf32, #tpu.memory_space<vmem>>, vector<1x128xf32>
    %c0_5 = arith.constant 0 : index
    %c0_6 = arith.constant 0 : index
    %c0_7 = arith.constant 0 : index
    %5 = vector.load %arg1[%c0_5, %c0_6, %c0_7] : memref<1x8x128xf32, #tpu.memory_space<vmem>>, vector<1x8x128xf32>
    %6 = vector.shape_cast %5 : vector<1x8x128xf32> to vector<8x128xf32>
    %7 = arith.truncf %6 : vector<8x128xf32> to vector<8x128xbf16>
    %c0_8 = arith.constant 0 : index
    %c0_9 = arith.constant 0 : index
    %8 = vector.load %arg2[%c0_8, %c0_9] : memref<128x256xbf16, #tpu.memory_space<vmem>>, vector<128x256xbf16>
    %cst = arith.constant dense<0.000000e+00> : vector<8x256xf32>
    %9 = tpu.matmul %7, %8, %cst {dimension_numbers = #tpu.dot_dimension_numbers<[1], [0], [0], [1], [0, 0, 1, 1], [], []>} : vector<8x128xbf16>, vector<128x256xbf16>, vector<8x256xf32> -> vector<8x256xf32>
    %cst_10 = arith.constant dense<0.000000e+00> : vector<256xf32>
    %10 = vector.multi_reduction <add>, %9, %cst_10 [0] : vector<8x256xf32> to vector<256xf32>
    %11 = vector.shape_cast %10 : vector<256xf32> to vector<1x256xf32>
    %12 = arith.mulf %9, %9 : vector<8x256xf32>
    %cst_11 = arith.constant dense<0.000000e+00> : vector<256xf32>
    %13 = vector.multi_reduction <add>, %12, %cst_11 [0] : vector<8x256xf32> to vector<256xf32>
    %14 = vector.shape_cast %13 : vector<256xf32> to vector<1x256xf32>
    %cst_12 = arith.constant 1.250000e-01 : f32
    %15 = vector.broadcast %cst_12 : f32 to vector<1x256xf32>
    %16 = arith.mulf %11, %15 : vector<1x256xf32>
    %cst_13 = arith.constant 1.250000e-01 : f32
    %17 = vector.broadcast %cst_13 : f32 to vector<1x256xf32>
    %18 = arith.mulf %14, %17 : vector<1x256xf32>
    %19 = arith.mulf %16, %16 : vector<1x256xf32>
    %20 = arith.subf %18, %19 : vector<1x256xf32>
    %cst_14 = arith.constant 9.99999974E-6 : f32
    %21 = vector.broadcast %cst_14 : f32 to vector<1x256xf32>
    %22 = arith.addf %20, %21 : vector<1x256xf32>
    %23 = math.rsqrt %22 : vector<1x256xf32>
    %24 = arith.mulf %0, %23 : vector<1x256xf32>
    %25 = arith.mulf %16, %24 : vector<1x256xf32>
    %26 = arith.subf %1, %25 : vector<1x256xf32>
    %27 = vector.broadcast %24 : vector<1x256xf32> to vector<8x256xf32>
    %28 = arith.mulf %9, %27 : vector<8x256xf32>
    %29 = vector.broadcast %26 : vector<1x256xf32> to vector<8x256xf32>
    %30 = arith.addf %28, %29 : vector<8x256xf32>
    %cst_15 = arith.constant 0.000000e+00 : f32
    %31 = vector.broadcast %cst_15 : f32 to vector<8x256xf32>
    %32 = arith.maximumf %30, %31 : vector<8x256xf32>
    %33 = arith.truncf %32 : vector<8x256xf32> to vector<8x256xbf16>
    %c0_16 = arith.constant 0 : index
    %c0_17 = arith.constant 0 : index
    %34 = vector.load %arg3[%c0_16, %c0_17] : memref<256x256xbf16, #tpu.memory_space<vmem>>, vector<256x256xbf16>
    %cst_18 = arith.constant dense<0.000000e+00> : vector<8x256xf32>
    %35 = tpu.matmul %33, %34, %cst_18 {dimension_numbers = #tpu.dot_dimension_numbers<[1], [0], [0], [1], [0, 0, 1, 1], [], []>} : vector<8x256xbf16>, vector<256x256xbf16>, vector<8x256xf32> -> vector<8x256xf32>
    %cst_19 = arith.constant dense<0.000000e+00> : vector<256xf32>
    %36 = vector.multi_reduction <add>, %35, %cst_19 [0] : vector<8x256xf32> to vector<256xf32>
    %37 = vector.shape_cast %36 : vector<256xf32> to vector<1x256xf32>
    %38 = arith.mulf %35, %35 : vector<8x256xf32>
    %cst_20 = arith.constant dense<0.000000e+00> : vector<256xf32>
    %39 = vector.multi_reduction <add>, %38, %cst_20 [0] : vector<8x256xf32> to vector<256xf32>
    %40 = vector.shape_cast %39 : vector<256xf32> to vector<1x256xf32>
    %cst_21 = arith.constant 1.250000e-01 : f32
    %41 = vector.broadcast %cst_21 : f32 to vector<1x256xf32>
    %42 = arith.mulf %37, %41 : vector<1x256xf32>
    %cst_22 = arith.constant 1.250000e-01 : f32
    %43 = vector.broadcast %cst_22 : f32 to vector<1x256xf32>
    %44 = arith.mulf %40, %43 : vector<1x256xf32>
    %45 = arith.mulf %42, %42 : vector<1x256xf32>
    %46 = arith.subf %44, %45 : vector<1x256xf32>
    %cst_23 = arith.constant 9.99999974E-6 : f32
    %47 = vector.broadcast %cst_23 : f32 to vector<1x256xf32>
    %48 = arith.addf %46, %47 : vector<1x256xf32>
    %49 = math.rsqrt %48 : vector<1x256xf32>
    %50 = arith.mulf %2, %49 : vector<1x256xf32>
    %51 = arith.mulf %42, %50 : vector<1x256xf32>
    %52 = arith.subf %3, %51 : vector<1x256xf32>
    %53 = vector.broadcast %50 : vector<1x256xf32> to vector<8x256xf32>
    %54 = arith.mulf %35, %53 : vector<8x256xf32>
    %55 = vector.broadcast %52 : vector<1x256xf32> to vector<8x256xf32>
    %56 = arith.addf %54, %55 : vector<8x256xf32>
    %cst_24 = arith.constant 0.000000e+00 : f32
    %57 = vector.broadcast %cst_24 : f32 to vector<8x256xf32>
    %58 = arith.maximumf %56, %57 : vector<8x256xf32>
    %59 = arith.truncf %58 : vector<8x256xf32> to vector<8x256xbf16>
    %c0_25 = arith.constant 0 : index
    %c0_26 = arith.constant 0 : index
    %60 = vector.load %arg4[%c0_25, %c0_26] : memref<256x128xbf16, #tpu.memory_space<vmem>>, vector<256x128xbf16>
    %cst_27 = arith.constant dense<0.000000e+00> : vector<8x128xf32>
    %61 = tpu.matmul %59, %60, %cst_27 {dimension_numbers = #tpu.dot_dimension_numbers<[1], [0], [0], [1], [0, 0, 1, 1], [], []>} : vector<8x256xbf16>, vector<256x128xbf16>, vector<8x128xf32> -> vector<8x128xf32>
    %62 = vector.broadcast %4 : vector<1x128xf32> to vector<8x128xf32>
    %63 = arith.addf %61, %62 : vector<8x128xf32>
    %c0_28 = arith.constant 0 : index
    %c0_29 = arith.constant 0 : index
    %c0_30 = arith.constant 0 : index
    %64 = vector.load %arg6[%c0_28, %c0_29, %c0_30] : memref<1x8x128xf32, #tpu.memory_space<vmem>>, vector<1x8x128xf32>
    %65 = vector.shape_cast %64 : vector<1x8x128xf32> to vector<8x128xf32>
    %66 = vector.shape_cast %63 : vector<8x128xf32> to vector<1x8x128xf32>
    tpu.vector_store %arg6[%c0_28, %c0_29, %c0_30], %66 {strides = array<i32>} : memref<1x8x128xf32, #tpu.memory_space<vmem>>, vector<1x8x128xf32>,
    return
  }
  func.func @transform_0(%arg0: i32) -> (i32, i32, i32) {
    %c0_i32 = arith.constant 0 : i32
    %c0_i32_0 = arith.constant 0 : i32
    %c0_i32_1 = arith.constant 0 : i32
    return %arg0, %c0_i32, %c0_i32_0 : i32, i32, i32
  }
  func.func @transform_1(%arg0: i32) -> (i32, i32) {
    %c0_i32 = arith.constant 0 : i32
    %c0_i32_0 = arith.constant 0 : i32
    %c0_i32_1 = arith.constant 0 : i32
    return %c0_i32, %c0_i32_0 : i32, i32
  }
  func.func @transform_2(%arg0: i32) -> (i32, i32) {
    %c0_i32 = arith.constant 0 : i32
    %c0_i32_0 = arith.constant 0 : i32
    %c0_i32_1 = arith.constant 0 : i32
    return %c0_i32, %c0_i32_0 : i32, i32
  }
  func.func @transform_3(%arg0: i32) -> (i32, i32) {
    %c0_i32 = arith.constant 0 : i32
    %c0_i32_0 = arith.constant 0 : i32
    %c0_i32_1 = arith.constant 0 : i32
    return %c0_i32, %c0_i32_0 : i32, i32
  }
  func.func @transform_4(%arg0: i32) -> (i32, i32) {
    %c0_i32 = arith.constant 0 : i32
    %c0_i32_0 = arith.constant 0 : i32
    %c0_i32_1 = arith.constant 0 : i32
    return %c0_i32, %c0_i32_0 : i32, i32
  }
  func.func @transform_5(%arg0: i32) -> (i32, i32, i32) {
    %c0_i32 = arith.constant 0 : i32
    %c0_i32_0 = arith.constant 0 : i32
    %c0_i32_1 = arith.constant 0 : i32
    return %arg0, %c0_i32, %c0_i32_0 : i32, i32, i32
  }
}

</mosaic_0001>

<llo_original>
// kernel: tpu_custom_call.1
$region0: #{tpu_custom_call.1}
  #allocation0 [shape = 'u32[]', space=smem, size = 0x4, offset = 0x4, fixed_abs, tag = 'smem constant byte address 0x4 - core index']
  #allocation1 [shape = 'u32[144,128]{1,0:T(1,128)}', space=vmem, size = 0x12000, scoped, tag = 'internal scratch']
  %s0 = inlined_call_operand.hbm [shape: f32[4,8,128], index: 0, kind: input, shape index: {}]
  %s1 = inlined_call_operand.hbm [shape: bf16[128,256], index: 1, kind: input, shape index: {}]
  %s2 = inlined_call_operand.hbm [shape: bf16[256,256], index: 2, kind: input, shape index: {}]
  %s3 = inlined_call_operand.hbm [shape: bf16[256,128], index: 3, kind: input, shape index: {}]
  %s4 = inlined_call_operand.hbm [shape: f32[8,256], index: 4, kind: input, shape index: {}]
  %s5 = inlined_call_operand.hbm [shape: f32[4,8,128], index: 5, kind: output, shape index: {}]
  %s6 = sld [smem:[#allocation0]]
  $region73: #{tpu_custom_call.1} parent=0
    _
  %s8 = ssub.s32 1, %s6
  %s9 = scalar_select 0, %s8, %s6
  $region1: #{tpu_custom_call.1} parent=0
    #allocation2 [shape = 'u8[8192]{0}', space=vmem, size = 0x2000, scoped, tag = 'input window, operand 0']
    #allocation3 [shape = 's32[2]{0}', space=sflag, size = 0x8, scoped, tag = 'scoped memory for tpu_custom_call.1']
    #allocation4 [shape = 's32[2]{0}', space=sflag, size = 0x8, scoped, tag = 'scoped memory for tpu_custom_call.1']
    #allocation5 [shape = 'u8[65536]{0}', space=vmem, size = 0x10000, scoped, tag = 'input window, operand 1, single buffered']
    #allocation6 [shape = 's32[1]{0}', space=sflag, size = 0x4, scoped, tag = 'scoped memory for tpu_custom_call.1']
    #allocation7 [shape = 'u8[131072]{0}', space=vmem, size = 0x20000, scoped, tag = 'input window, operand 2, single buffered']
    #allocation8 [shape = 'u8[65536]{0}', space=vmem, size = 0x10000, scoped, tag = 'input window, operand 3, single buffered']
    #allocation9 [shape = 's32[1]{0}', space=sflag, size = 0x4, scoped, tag = 'scoped memory for tpu_custom_call.1']
    #allocation10 [shape = 'u8[8192]{0}', space=vmem, size = 0x2000, scoped, tag = 'input window, operand 4, single buffered']
    #allocation11 [shape = 'u8[8192]{0}', space=vmem, size = 0x2000, scoped, tag = 'output window, operand 0']
    %10 = vsyncpa [#allocation3], 0
    %s11 = scalar_lea.sflag [#allocation3], 1
    %12 = vsyncpa %s11, 0
    %13 = vsyncpa [#allocation6], 0
    %14 = vsyncpa [#allocation9], 0
    %15 = vsyncpa [#allocation4], 0
    %s16 = scalar_lea.sflag [#allocation4], 1
    %17 = vsyncpa %s16, 0
    loop: start=0, step=1, limit=6
    $region2: #{tpu_custom_call.1} parent=1 // loop_pre_header
      _
    $region3: #{tpu_custom_call.1} parent=1 // loop_header
      %s19 = sphi 0, %s23
      %p20 = scmp.ge.s32.totalorder %s19, 6
      %s29 = sphi 0, %s31
      %s32 = sphi 0, %s29
      %s33 = sphi 0, %s32
      %s49 = sphi 0, %s33
      %s53 = sphi 0, %s53
      %s55 = sphi 0, %s53
      %s56 = sphi 0, %s55
      %s70 = sphi 0, %s56
      %s74 = sphi 0, %s74
      %s76 = sphi 0, %s74
      %s77 = sphi 0, %s76
      %s91 = sphi 0, %s77
      %s95 = sphi 0, %s95
      %s97 = sphi 0, %s95
      %s98 = sphi 0, %s97
      %s112 = sphi 0, %s98
      %s116 = sphi 0, %s116
      %s118 = sphi 0, %s116
      %s119 = sphi 0, %s118
      %s133 = sphi 0, %s119
      %s139 = sphi 0, %s141
      %s142 = sphi 0, %s139
      %s143 = sphi 0, %s142
      %s159 = sphi 0, %s143
    $region4: #{tpu_custom_call.1} parent=1 // loop_header_branch
      %22 = sbr.rel (%p20) target = $region8
    $region5: #{tpu_custom_call.1} parent=1 // loop_body
      %s24 = ssub.s32 %s19, 1
      %s25 = ssub.s32 %s19, 2
      %s26 = sadd.s32 %s19, 1
      %s27 = ssub.s32 %s19, %s26
      %p28 = scmp.eq.s32.totalorder %s27, 0
      %s30 = sadd.s32 %s29, 1
      %s31 = scalar_select %p28, %s29, %s30
      %p34 = pneg %p28
      %p35 = scmp.eq.s32.totalorder %s19, 3
      %p36 = por %p34, %p35
      %p37 = scmp.ne.s32.totalorder %s29, %s32
      %p38 = scmp.eq.s32.totalorder %s19, 0
      %p39 = por %p37, %p38
      %p40 = scmp.ne.s32.totalorder %s29, %s32
      %p41 = scmp.eq.s32.totalorder %s24, 3
      %p42 = por %p40, %p41
      %p43 = scmp.ne.s32.totalorder %s32, %s33
      %p44 = scmp.eq.s32.totalorder %s24, 0
      %p45 = por %p43, %p44
      %p46 = scmp.ne.s32.totalorder %s32, %s33
      %p47 = scmp.eq.s32.totalorder %s25, 3
      %p48 = por %p46, %p47
      %p50 = scmp.ne.s32.totalorder %s33, %s49
      %p51 = scmp.eq.s32.totalorder %s25, 0
      %p52 = por %p50, %p51
      %s54 = sadd.s32 %s53, 1
      %p57 = scmp.eq.s32.totalorder %s19, 3
      %p58 = scmp.ne.s32.totalorder %s53, %s55
      %p59 = scmp.eq.s32.totalorder %s19, 0
      %p60 = por %p58, %p59
      %p61 = scmp.ne.s32.totalorder %s53, %s55
      %p62 = scmp.eq.s32.totalorder %s24, 3
      %p63 = por %p61, %p62
      %p64 = scmp.ne.s32.totalorder %s55, %s56
      %p65 = scmp.eq.s32.totalorder %s24, 0
      %p66 = por %p64, %p65
      %p67 = scmp.ne.s32.totalorder %s55, %s56
      %p68 = scmp.eq.s32.totalorder %s25, 3
      %p69 = por %p67, %p68
      %p71 = scmp.ne.s32.totalorder %s56, %s70
      %p72 = scmp.eq.s32.totalorder %s25, 0
      %p73 = por %p71, %p72
      %s75 = sadd.s32 %s74, 1
      %p78 = scmp.eq.s32.totalorder %s19, 3
      %p79 = scmp.ne.s32.totalorder %s74, %s76
      %p80 = scmp.eq.s32.totalorder %s19, 0
      %p81 = por %p79, %p80
      %p82 = scmp.ne.s32.totalorder %s74, %s76
      %p83 = scmp.eq.s32.totalorder %s24, 3
      %p84 = por %p82, %p83
      %p85 = scmp.ne.s32.totalorder %s76, %s77
      %p86 = scmp.eq.s32.totalorder %s24, 0
      %p87 = por %p85, %p86
      %p88 = scmp.ne.s32.totalorder %s76, %s77
      %p89 = scmp.eq.s32.totalorder %s25, 3
      %p90 = por %p88, %p89
      %p92 = scmp.ne.s32.totalorder %s77, %s91
      %p93 = scmp.eq.s32.totalorder %s25, 0
      %p94 = por %p92, %p93
      %s96 = sadd.s32 %s95, 1
      %p99 = scmp.eq.s32.totalorder %s19, 3
      %p100 = scmp.ne.s32.totalorder %s95, %s97
      %p101 = scmp.eq.s32.totalorder %s19, 0
      %p102 = por %p100, %p101
      %p103 = scmp.ne.s32.totalorder %s95, %s97
      %p104 = scmp.eq.s32.totalorder %s24, 3
      %p105 = por %p103, %p104
      %p106 = scmp.ne.s32.totalorder %s97, %s98
      %p107 = scmp.eq.s32.totalorder %s24, 0
      %p108 = por %p106, %p107
      %p109 = scmp.ne.s32.totalorder %s97, %s98
      %p110 = scmp.eq.s32.totalorder %s25, 3
      %p111 = por %p109, %p110
      %p113 = scmp.ne.s32.totalorder %s98, %s112
      %p114 = scmp.eq.s32.totalorder %s25, 0
      %p115 = por %p113, %p114
      %s117 = sadd.s32 %s116, 1
      %p120 = scmp.eq.s32.totalorder %s19, 3
      %p121 = scmp.ne.s32.totalorder %s116, %s118
      %p122 = scmp.eq.s32.totalorder %s19, 0
      %p123 = por %p121, %p122
      %p124 = scmp.ne.s32.totalorder %s116, %s118
      %p125 = scmp.eq.s32.totalorder %s24, 3
      %p126 = por %p124, %p125
      %p127 = scmp.ne.s32.totalorder %s118, %s119
      %p128 = scmp.eq.s32.totalorder %s24, 0
      %p129 = por %p127, %p128
      %p130 = scmp.ne.s32.totalorder %s118, %s119
      %p131 = scmp.eq.s32.totalorder %s25, 3
      %p132 = por %p130, %p131
      %p134 = scmp.ne.s32.totalorder %s119, %s133
      %p135 = scmp.eq.s32.totalorder %s25, 0
      %p136 = por %p134, %p135
      %s137 = ssub.s32 %s19, %s26
      %p138 = scmp.eq.s32.totalorder %s137, 0
      %s140 = sadd.s32 %s139, 1
      %s141 = scalar_select %p138, %s139, %s140
      %p144 = pneg %p138
      %p145 = scmp.eq.s32.totalorder %s19, 3
      %p146 = por %p144, %p145
      %p147 = scmp.ne.s32.totalorder %s139, %s142
      %p148 = scmp.eq.s32.totalorder %s19, 0
      %p149 = por %p147, %p148
      %p150 = scmp.ne.s32.totalorder %s139, %s142
      %p151 = scmp.eq.s32.totalorder %s24, 3
      %p152 = por %p150, %p151
      %p153 = scmp.ne.s32.totalorder %s142, %s143
      %p154 = scmp.eq.s32.totalorder %s24, 0
      %p155 = por %p153, %p154
      %p156 = scmp.ne.s32.totalorder %s142, %s143
      %p157 = scmp.eq.s32.totalorder %s25, 3
      %p158 = por %p156, %p157
      %p160 = scmp.ne.s32.totalorder %s143, %s159
      %p161 = scmp.eq.s32.totalorder %s25, 0
      %p162 = por %p160, %p161
      %p163 = scmp.le.s32.totalorder 1, %s19
      %p164 = scmp.lt.s32.totalorder %s19, 5
      %p165 = pnand %p163, %p164
      %p166 = pneg %p165
      // Predicated region
      $region9: #{tpu_custom_call.1} parent=5 // pred_check
        _
      $region10: #{tpu_custom_call.1} parent=5 // pred_check_branch
        %168 = sbr.rel (%p165) target = $region12
      $region11: #{tpu_custom_call.1} parent=5 // pred_region
        %s169 = ssub.s32 %s19, 1
        // Predicated region
        $region13: #{tpu_custom_call.1} parent=11 // pred_check
          %p170 = pneg %p66
        $region14: #{tpu_custom_call.1} parent=11 // pred_check_branch
          %172 = sbr.rel (%p170) target = $region16
        $region15: #{tpu_custom_call.1} parent=11 // pred_region
          %s174 = ssub.s32 2048, 2048
          %175 = vsyncadd [#allocation6], %s174
          %s176 = sshll.u32 [#allocation5], 4
          %s177 = int_to_ptr.vmem [resolvable:$true] %s176
          %182 = dma.hbm_to_vmem [thread:$0]  %s1, 2048, %s177, [#allocation6], 128, 128, 8
        $region16: #{tpu_custom_call.1} parent=11 // pred_fallthru
          _
        // Predicated region
        $region17: #{tpu_custom_call.1} parent=11 // pred_check
          %p183 = pneg %p87
        $region18: #{tpu_custom_call.1} parent=11 // pred_check_branch
          %185 = sbr.rel (%p183) target = $region20
        $region19: #{tpu_custom_call.1} parent=11 // pred_region
          %s187 = ssub.s32 4096, 4096
          %188 = vsyncadd [#allocation6], %s187
          %s189 = sshll.u32 [#allocation7], 4
          %s190 = int_to_ptr.vmem [resolvable:$true] %s189
          %195 = dma.hbm_to_vmem [thread:$0]  %s2, 4096, %s190, [#allocation6], 128, 128, 8
        $region20: #{tpu_custom_call.1} parent=11 // pred_fallthru
          _
        // Predicated region
        $region21: #{tpu_custom_call.1} parent=11 // pred_check
          %p196 = pneg %p108
        $region22: #{tpu_custom_call.1} parent=11 // pred_check_branch
          %198 = sbr.rel (%p196) target = $region24
        $region23: #{tpu_custom_call.1} parent=11 // pred_region
          %s200 = ssub.s32 2048, 2048
          %201 = vsyncadd [#allocation9], %s200
          %s202 = sshll.u32 [#allocation8], 4
          %s203 = int_to_ptr.vmem [resolvable:$true] %s202
          %208 = dma.hbm_to_vmem [thread:$0]  %s3, 2048, %s203, [#allocation9], 64, 64, 4
        $region24: #{tpu_custom_call.1} parent=11 // pred_fallthru
          _
        // Predicated region
        $region25: #{tpu_custom_call.1} parent=11 // pred_check
          %p209 = pneg %p129
        $region26: #{tpu_custom_call.1} parent=11 // pred_check_branch
          %211 = sbr.rel (%p209) target = $region28
        $region27: #{tpu_custom_call.1} parent=11 // pred_region
          %s213 = ssub.s32 256, 256
          %214 = vsyncadd [#allocation9], %s213
          %s216 = sshll.u32 [#allocation10], 4
          %s217 = int_to_ptr.vmem [resolvable:$true] %s216
          %219 = dma.hbm_to_vmem [thread:$0]  %s4, 256, %s217, [#allocation9]
        $region28: #{tpu_custom_call.1} parent=11 // pred_fallthru
          _
      $region12: #{tpu_custom_call.1} parent=5 // pred_fallthru
        _
      %p220 = scmp.lt.s32.totalorder %s19, 4
      // Predicated region
      $region29: #{tpu_custom_call.1} parent=5 // pred_check
        %p221 = pneg %p220
      $region30: #{tpu_custom_call.1} parent=5 // pred_check_branch
        %223 = sbr.rel (%p221) target = $region32
      $region31: #{tpu_custom_call.1} parent=5 // pred_region
        // Predicated region
        $region33: #{tpu_custom_call.1} parent=31 // pred_check
          %p224 = pneg %p39
        $region34: #{tpu_custom_call.1} parent=31 // pred_check_branch
          %226 = sbr.rel (%p224) target = $region36
        $region35: #{tpu_custom_call.1} parent=31 // pred_region
          %s227 = sand.u32 %s29, 1
          %s228 = scalar_lea.sflag [#allocation3], %s227
          %s229 = sand.u32 %s29, 1
          %s230 = smul.addr %s229, 8
          %s231 = scalar_lea.vmem [#allocation2], %s230
          %s233 = ssub.s32 128, 128
          %234 = vsyncadd %s228, %s233
          %s235 = smul.addr %s19, 128
          %s236 = scalar_lea.hbm %s0, %s235
          %s238 = sshll.u32 %s231, 4
          %s239 = int_to_ptr.vmem [resolvable:$true] %s238
          %241 = dma.hbm_to_vmem [thread:$0]  %s236, 128, %s239, %s228
        $region36: #{tpu_custom_call.1} parent=31 // pred_fallthru
          _
      $region32: #{tpu_custom_call.1} parent=5 // pred_fallthru
        _
      %p242 = scmp.le.s32.totalorder 1, %s19
      %p243 = scmp.lt.s32.totalorder %s19, 5
      %p244 = pnand %p242, %p243
      %p245 = pneg %p244
      // Predicated region
      $region37: #{tpu_custom_call.1} parent=5 // pred_check
        _
      $region38: #{tpu_custom_call.1} parent=5 // pred_check_branch
        %247 = sbr.rel (%p244) target = $region40
      $region39: #{tpu_custom_call.1} parent=5 // pred_region
        %s248 = ssub.s32 %s19, 1
        %s249 = sand.u32 %s32, 1
        %s250 = scalar_lea.sflag [#allocation3], %s249
        %s251 = sand.u32 %s32, 1
        %s252 = smul.addr %s251, 8
        %s253 = scalar_lea.vmem [#allocation2], %s252
        // Predicated region
        $region41: #{tpu_custom_call.1} parent=39 // pred_check
          %p254 = pneg %p45
        $region42: #{tpu_custom_call.1} parent=39 // pred_check_branch
          %256 = sbr.rel (%p254) target = $region44
        $region43: #{tpu_custom_call.1} parent=39 // pred_region
          %257 = dma.done %s250, 128
        $region44: #{tpu_custom_call.1} parent=39 // pred_fallthru
          _
        // Predicated region
        $region45: #{tpu_custom_call.1} parent=39 // pred_check
          %p258 = pneg %p66
        $region46: #{tpu_custom_call.1} parent=39 // pred_check_branch
          %260 = sbr.rel (%p258) target = $region48
        $region47: #{tpu_custom_call.1} parent=39 // pred_region
          %261 = dma.done [#allocation6], 2048
        $region48: #{tpu_custom_call.1} parent=39 // pred_fallthru
          _
        // Predicated region
        $region49: #{tpu_custom_call.1} parent=39 // pred_check
          %p262 = pneg %p87
        $region50: #{tpu_custom_call.1} parent=39 // pred_check_branch
          %264 = sbr.rel (%p262) target = $region52
        $region51: #{tpu_custom_call.1} parent=39 // pred_region
          %265 = dma.done [#allocation6], 4096
        $region52: #{tpu_custom_call.1} parent=39 // pred_fallthru
          _
        // Predicated region
        $region53: #{tpu_custom_call.1} parent=39 // pred_check
          %p266 = pneg %p108
        $region54: #{tpu_custom_call.1} parent=39 // pred_check_branch
          %268 = sbr.rel (%p266) target = $region56
        $region55: #{tpu_custom_call.1} parent=39 // pred_region
          %269 = dma.done [#allocation9], 2048
        $region56: #{tpu_custom_call.1} parent=39 // pred_fallthru
          _
        // Predicated region
        $region57: #{tpu_custom_call.1} parent=39 // pred_check
          %p270 = pneg %p129
        $region58: #{tpu_custom_call.1} parent=39 // pred_check_branch
          %272 = sbr.rel (%p270) target = $region60
        $region59: #{tpu_custom_call.1} parent=39 // pred_region
          %273 = dma.done [#allocation9], 256
        $region60: #{tpu_custom_call.1} parent=39 // pred_fallthru
          _
        %s274 = sand.u32 %s32, 1
        %s275 = scalar_lea.sflag [#allocation3], %s274
        %s276 = sand.u32 %s32, 1
        %s277 = smul.addr %s276, 8
        %s278 = scalar_lea.vmem [#allocation2], %s277
        %p279 = pneg %p45
        %p280 = pneg %p42
        %p281 = pneg %p66
        %p282 = pneg %p63
        %p283 = pneg %p87
        %p284 = pneg %p84
        %p285 = pneg %p108
        %p286 = pneg %p105
        %p287 = pneg %p129
        %p288 = pneg %p126
        %p289 = pneg %p155
        %p290 = pneg %p152
        %s291 = sand.u32 %s142, 1
        %s292 = scalar_lea.sflag [#allocation4], %s291
        %s293 = sand.u32 %s142, 1
        %s294 = smul.addr %s293, 8
        %s295 = scalar_lea.vmem [#allocation11], %s294
        %v297 = vld [vmem:[#allocation10] ss:$8 sm:$0x3]
        %s298 = scalar_lea.vmem [#allocation10], 1
        %v299 = vld [vmem:[%s298] ss:$8 sm:$0x3]
        %s300 = scalar_lea.vmem [#allocation10], 2
        %v301 = vld [vmem:[%s300] ss:$8 sm:$0x3]
        %s302 = scalar_lea.vmem [#allocation10], 3
        %v303 = vld [vmem:[%s302] ss:$8 sm:$0x3]
        %v304 = vld [vmem:[#allocation10 + $0x4] ss:$0 sm:$0xff]
        %v305 = vld [vmem:[%s253] sm:$0xff]
        %v306 = vpack.c.bf16 %v305, %v305
        %v307 = vld [vmem:[#allocation5] sm:$0xff]
        %v308 = vld [vmem:[#allocation5 + $0x8] sm:$0xff]
        %v309 = vld [vmem:[#allocation5 + $0x10] sm:$0xff]
        %v310 = vld [vmem:[#allocation5 + $0x18] sm:$0xff]
        %v311 = vld [vmem:[#allocation5 + $0x20] sm:$0xff]
        %v312 = vld [vmem:[#allocation5 + $0x28] sm:$0xff]
        %v313 = vld [vmem:[#allocation5 + $0x30] sm:$0xff]
        %v314 = vld [vmem:[#allocation5 + $0x38] sm:$0xff]
        %v315 = vld [vmem:[#allocation5 + $0x40] sm:$0xff]
        %v316 = vld [vmem:[#allocation5 + $0x48] sm:$0xff]
        %v317 = vld [vmem:[#allocation5 + $0x50] sm:$0xff]
        %v318 = vld [vmem:[#allocation5 + $0x58] sm:$0xff]
        %v319 = vld [vmem:[#allocation5 + $0x60] sm:$0xff]
        %v320 = vld [vmem:[#allocation5 + $0x68] sm:$0xff]
        %v321 = vld [vmem:[#allocation5 + $0x70] sm:$0xff]
        %v322 = vld [vmem:[#allocation5 + $0x78] sm:$0xff]
        %v339 = vunpack.c.l.b16 %v307
        %v340 = vunpack.c.h.b16 %v307
        %v341 = vunpack.c.l.b16 %v308
        %v342 = vunpack.c.h.b16 %v308
        %v343 = vunpack.c.l.b16 %v309
        %v344 = vunpack.c.h.b16 %v309
        %v345 = vunpack.c.l.b16 %v310
        %v346 = vunpack.c.h.b16 %v310
        %v347 = vunpack.c.l.b16 %v311
        %v348 = vunpack.c.h.b16 %v311
        %v349 = vunpack.c.l.b16 %v312
        %v350 = vunpack.c.h.b16 %v312
        %v351 = vunpack.c.l.b16 %v313
        %v352 = vunpack.c.h.b16 %v313
        %v353 = vunpack.c.l.b16 %v314
        %v354 = vunpack.c.h.b16 %v314
        %v355 = vunpack.c.l.b16 %v315
        %v356 = vunpack.c.h.b16 %v315
        %v357 = vunpack.c.l.b16 %v316
        %v358 = vunpack.c.h.b16 %v316
        %v359 = vunpack.c.l.b16 %v317
        %v360 = vunpack.c.h.b16 %v317
        %v361 = vunpack.c.l.b16 %v318
        %v362 = vunpack.c.h.b16 %v318
        %v363 = vunpack.c.l.b16 %v319
        %v364 = vunpack.c.h.b16 %v319
        %v365 = vunpack.c.l.b16 %v320
        %v366 = vunpack.c.h.b16 %v320
        %v367 = vunpack.c.l.b16 %v321
        %v368 = vunpack.c.h.b16 %v321
        %v369 = vunpack.c.l.b16 %v322
        %v370 = vunpack.c.h.b16 %v322
        %v371 = vpack.c.b16 %v341, %v339
        %v372 = vpack.c.b16 %v342, %v340
        %v373 = vpack.c.b16 %v345, %v343
        %v374 = vpack.c.b16 %v346, %v344
        %v375 = vpack.c.b16 %v349, %v347
        %v376 = vpack.c.b16 %v350, %v348
        %v377 = vpack.c.b16 %v353, %v351
        %v378 = vpack.c.b16 %v354, %v352
        %v379 = vpack.c.b16 %v357, %v355
        %v380 = vpack.c.b16 %v358, %v356
        %v381 = vpack.c.b16 %v361, %v359
        %v382 = vpack.c.b16 %v362, %v360
        %v383 = vpack.c.b16 %v365, %v363
        %v384 = vpack.c.b16 %v366, %v364
        %v385 = vpack.c.b16 %v369, %v367
        %v386 = vpack.c.b16 %v370, %v368
        %403 = vmatprep.subr.bf16.mxu0 %v372
        %404 = vmatpush1.bf16.msra.mxu0 %v371
        %405 = vmatprep.subr.bf16.mxu0 %v374
        %406 = vmatpush1.bf16.msra.mxu0 %v373
        %407 = vmatprep.subr.bf16.mxu0 %v376
        %408 = vmatpush1.bf16.msra.mxu0 %v375
        %409 = vmatprep.subr.bf16.mxu0 %v378
        %410 = vmatpush1.bf16.msra.mxu0 %v377
        %411 = vmatprep.subr.bf16.mxu0 %v380
        %412 = vmatpush1.bf16.msra.mxu0 %v379
        %413 = vmatprep.subr.bf16.mxu0 %v382
        %414 = vmatpush1.bf16.msra.mxu0 %v381
        %415 = vmatprep.subr.bf16.mxu0 %v384
        %416 = vmatpush1.bf16.msra.mxu0 %v383
        %417 = vmatprep.subr.bf16.mxu0 %v386
        %418 = vmatpush1.bf16.msra.mxu0 %v385
        %419 = vmatprep.subr.bf16.mxu0 0
        %420 = vmatpush1.bf16.msra.mxu0 0
        %421 = vmatprep.subr.bf16.mxu0 0
        %422 = vmatpush1.bf16.msra.mxu0 0
        %423 = vmatprep.subr.bf16.mxu0 0
        %424 = vmatpush1.bf16.msra.mxu0 0
        %425 = vmatprep.subr.bf16.mxu0 0
        %426 = vmatpush1.bf16.msra.mxu0 0
        %427 = vmatprep.subr.bf16.mxu0 0
        %428 = vmatpush1.bf16.msra.mxu0 0
        %429 = vmatprep.subr.bf16.mxu0 0
        %430 = vmatpush1.bf16.msra.mxu0 0
        %431 = vmatprep.subr.bf16.mxu0 0
        %432 = vmatpush1.bf16.msra.mxu0 0
        %433 = vmatprep.subr.bf16.mxu0 0
        %434 = vmatpush1.bf16.msra.mxu0 0
        %435 = vmatprep.mubr.bf16.mxu0 0
        %436 = vmatmul.mubr.bf16.gmra.mrb[0].mxu0 %v306
        %v437 = vpop.f32.mrb[0].mxu0
        %v438 = vadd.f32 0.0, %v437
        %v439 = vpop.f32.mrb[0].mxu0
        %v440 = vadd.f32 0.0, %v439
        %v441 = vpop.f32.mrb[0].mxu0
        %v442 = vpop.f32.mrb[0].mxu0
        %443 = vdwg.mxu0
        %v444 = vrot.slane %v438, 4
        %v445 = vadd.f32 %v438, %v444
        %v446 = vrot.slane %v445, 2
        %v447 = vadd.f32 %v445, %v446
        %v448 = vrot.slane %v447, 1
        %v449 = vadd.f32 %v447, %v448
        %v450 = vrot.slane %v440, 4
        %v451 = vadd.f32 %v440, %v450
        %v452 = vrot.slane %v451, 2
        %v453 = vadd.f32 %v451, %v452
        %v454 = vrot.slane %v453, 1
        %v455 = vadd.f32 %v453, %v454
        %v456 = vmul.f32 %v438, %v438
        %v457 = vmul.f32 %v440, %v440
        %v458 = vrot.slane %v456, 4
        %v459 = vadd.f32 %v456, %v458
        %v460 = vrot.slane %v459, 2
        %v461 = vadd.f32 %v459, %v460
        %v462 = vrot.slane %v461, 1
        %v463 = vadd.f32 %v461, %v462
        %v464 = vrot.slane %v457, 4
        %v465 = vadd.f32 %v457, %v464
        %v466 = vrot.slane %v465, 2
        %v467 = vadd.f32 %v465, %v466
        %v468 = vrot.slane %v467, 1
        %v469 = vadd.f32 %v467, %v468
        %v470 = vmul.f32 %v449, 0.125
        %v471 = vmul.f32 %v455, 0.125
        %v472 = vmul.f32 %v463, 0.125
        %v473 = vmul.f32 %v469, 0.125
        %v474 = vmul.f32 %v470, %v470
        %v475 = vmul.f32 %v471, %v471
        %v476 = vsub.f32 %v472, %v474
        %v477 = vsub.f32 %v473, %v475
        %v478 = vadd.f32 %v476, 1e-05
        %v479 = vadd.f32 %v477, 1e-05
        %v480 = vrsqrt.pop %v478
        %v481 = vrsqrt.pop %v479
        %v484 = vcombine.low %v480, %v481
        %v486 = vunpack.c.l.s4 1966171168
        %v487 = vunpack.c.0.s8 %v486
        %v488 = vlaneseq
        %v489 = vshrl.u32 %v488, 7
        %v490 = vsub.s32 %v487, %v489
        %v491 = vrot.slane %v484, %v490
        %v493 = vunpack.c.l.s4 1966171168
        %v494 = vunpack.c.0.s8 %v493
        %v495 = vlaneseq
        %v496 = vshrl.u32 %v495, 7
        %v497 = vsub.s32 %v494, %v496
        %v498 = vrot.slane %v491, %v497
        %v500 = vmul.f32 %v297, %v498
        %v502 = vlaneseq
        %v503 = vshrl.u32 %v502, 7
        %v504 = vsub.s32 0, %v503
        %v505 = vrot.slane %v500, %v504
        %v506 = vlaneseq
        %v507 = vshrl.u32 %v506, 7
        %v508 = vsub.s32 1, %v507
        %v509 = vrot.slane %v500, %v508
        %v512 = vmul.f32 %v470, %v505
        %v513 = vmul.f32 %v471, %v509
        %v516 = vcombine.low %v512, %v513
        %v518 = vunpack.c.l.s4 1966171168
        %v519 = vunpack.c.0.s8 %v518
        %v520 = vlaneseq
        %v521 = vshrl.u32 %v520, 7
        %v522 = vsub.s32 %v519, %v521
        %v523 = vrot.slane %v516, %v522
        %v525 = vunpack.c.l.s4 1966171168
        %v526 = vunpack.c.0.s8 %v525
        %v527 = vlaneseq
        %v528 = vshrl.u32 %v527, 7
        %v529 = vsub.s32 %v526, %v528
        %v530 = vrot.slane %v523, %v529
        %v532 = vsub.f32 %v299, %v530
        %v533 = vmul.f32 %v438, %v505
        %v534 = vmul.f32 %v440, %v509
        %v536 = vlaneseq
        %v537 = vshrl.u32 %v536, 7
        %v538 = vsub.s32 0, %v537
        %v539 = vrot.slane %v532, %v538
        %v540 = vlaneseq
        %v541 = vshrl.u32 %v540, 7
        %v542 = vsub.s32 1, %v541
        %v543 = vrot.slane %v532, %v542
        %v546 = vadd.f32 %v533, %v539
        %v547 = vadd.f32 %v534, %v543
        %v548 = vmax.f32 %v546, 0.0
        %v549 = vmax.f32 %v547, 0.0
        %v550 = vpack.c.bf16 %v548, %v548
        %v551 = vpack.c.bf16 %v549, %v549
        %v552 = vld [vmem:[#allocation7] sm:$0xff]
        %v553 = vld [vmem:[#allocation7 + $0x8] sm:$0xff]
        %v554 = vld [vmem:[#allocation7 + $0x10] sm:$0xff]
        %v555 = vld [vmem:[#allocation7 + $0x18] sm:$0xff]
        %v556 = vld [vmem:[#allocation7 + $0x20] sm:$0xff]
        %v557 = vld [vmem:[#allocation7 + $0x28] sm:$0xff]
        %v558 = vld [vmem:[#allocation7 + $0x30] sm:$0xff]
        %v559 = vld [vmem:[#allocation7 + $0x38] sm:$0xff]
        %v560 = vld [vmem:[#allocation7 + $0x40] sm:$0xff]
        %v561 = vld [vmem:[#allocation7 + $0x48] sm:$0xff]
        %v562 = vld [vmem:[#allocation7 + $0x50] sm:$0xff]
        %v563 = vld [vmem:[#allocation7 + $0x58] sm:$0xff]
        %v564 = vld [vmem:[#allocation7 + $0x60] sm:$0xff]
        %v565 = vld [vmem:[#allocation7 + $0x68] sm:$0xff]
        %v566 = vld [vmem:[#allocation7 + $0x70] sm:$0xff]
        %v567 = vld [vmem:[#allocation7 + $0x78] sm:$0xff]
        %v568 = vld [vmem:[#allocation7 + $0x80] sm:$0xff]
        %v569 = vld [vmem:[#allocation7 + $0x88] sm:$0xff]
        %v570 = vld [vmem:[#allocation7 + $0x90] sm:$0xff]
        %v571 = vld [vmem:[#allocation7 + $0x98] sm:$0xff]
        %v572 = vld [vmem:[#allocation7 + $0xa0] sm:$0xff]
        %v573 = vld [vmem:[#allocation7 + $0xa8] sm:$0xff]
        %v574 = vld [vmem:[#allocation7 + $0xb0] sm:$0xff]
        %v575 = vld [vmem:[#allocation7 + $0xb8] sm:$0xff]
        %v576 = vld [vmem:[#allocation7 + $0xc0] sm:$0xff]
        %v577 = vld [vmem:[#allocation7 + $0xc8] sm:$0xff]
        %v578 = vld [vmem:[#allocation7 + $0xd0] sm:$0xff]
        %v579 = vld [vmem:[#allocation7 + $0xd8] sm:$0xff]
        %v580 = vld [vmem:[#allocation7 + $0xe0] sm:$0xff]
        %v581 = vld [vmem:[#allocation7 + $0xe8] sm:$0xff]
        %v582 = vld [vmem:[#allocation7 + $0xf0] sm:$0xff]
        %v583 = vld [vmem:[#allocation7 + $0xf8] sm:$0xff]
        %v616 = vunpack.c.l.b16 %v552
        %v617 = vunpack.c.h.b16 %v552
        %v618 = vunpack.c.l.b16 %v553
        %v619 = vunpack.c.h.b16 %v553
        %v620 = vunpack.c.l.b16 %v554
        %v621 = vunpack.c.h.b16 %v554
        %v622 = vunpack.c.l.b16 %v555
        %v623 = vunpack.c.h.b16 %v555
        %v624 = vunpack.c.l.b16 %v556
        %v625 = vunpack.c.h.b16 %v556
        %v626 = vunpack.c.l.b16 %v557
        %v627 = vunpack.c.h.b16 %v557
        %v628 = vunpack.c.l.b16 %v558
        %v629 = vunpack.c.h.b16 %v558
        %v630 = vunpack.c.l.b16 %v559
        %v631 = vunpack.c.h.b16 %v559
        %v632 = vunpack.c.l.b16 %v560
        %v633 = vunpack.c.h.b16 %v560
        %v634 = vunpack.c.l.b16 %v561
        %v635 = vunpack.c.h.b16 %v561
        %v636 = vunpack.c.l.b16 %v562
        %v637 = vunpack.c.h.b16 %v562
        %v638 = vunpack.c.l.b16 %v563
        %v639 = vunpack.c.h.b16 %v563
        %v640 = vunpack.c.l.b16 %v564
        %v641 = vunpack.c.h.b16 %v564
        %v642 = vunpack.c.l.b16 %v565
        %v643 = vunpack.c.h.b16 %v565
        %v644 = vunpack.c.l.b16 %v566
        %v645 = vunpack.c.h.b16 %v566
        %v646 = vunpack.c.l.b16 %v567
        %v647 = vunpack.c.h.b16 %v567
        %v648 = vunpack.c.l.b16 %v568
        %v649 = vunpack.c.h.b16 %v568
        %v650 = vunpack.c.l.b16 %v569
        %v651 = vunpack.c.h.b16 %v569
        %v652 = vunpack.c.l.b16 %v570
        %v653 = vunpack.c.h.b16 %v570
        %v654 = vunpack.c.l.b16 %v571
        %v655 = vunpack.c.h.b16 %v571
        %v656 = vunpack.c.l.b16 %v572
        %v657 = vunpack.c.h.b16 %v572
        %v658 = vunpack.c.l.b16 %v573
        %v659 = vunpack.c.h.b16 %v573
        %v660 = vunpack.c.l.b16 %v574
        %v661 = vunpack.c.h.b16 %v574
        %v662 = vunpack.c.l.b16 %v575
        %v663 = vunpack.c.h.b16 %v575
        %v664 = vunpack.c.l.b16 %v576
        %v665 = vunpack.c.h.b16 %v576
        %v666 = vunpack.c.l.b16 %v577
        %v667 = vunpack.c.h.b16 %v577
        %v668 = vunpack.c.l.b16 %v578
        %v669 = vunpack.c.h.b16 %v578
        %v670 = vunpack.c.l.b16 %v579
        %v671 = vunpack.c.h.b16 %v579
        %v672 = vunpack.c.l.b16 %v580
        %v673 = vunpack.c.h.b16 %v580
        %v674 = vunpack.c.l.b16 %v581
        %v675 = vunpack.c.h.b16 %v581
        %v676 = vunpack.c.l.b16 %v582
        %v677 = vunpack.c.h.b16 %v582
        %v678 = vunpack.c.l.b16 %v583
        %v679 = vunpack.c.h.b16 %v583
        %v680 = vpack.c.b16 %v618, %v616
        %v681 = vpack.c.b16 %v619, %v617
        %v682 = vpack.c.b16 %v622, %v620
        %v683 = vpack.c.b16 %v623, %v621
        %v684 = vpack.c.b16 %v626, %v624
        %v685 = vpack.c.b16 %v627, %v625
        %v686 = vpack.c.b16 %v630, %v628
        %v687 = vpack.c.b16 %v631, %v629
        %v688 = vpack.c.b16 %v634, %v632
        %v689 = vpack.c.b16 %v635, %v633
        %v690 = vpack.c.b16 %v638, %v636
        %v691 = vpack.c.b16 %v639, %v637
        %v692 = vpack.c.b16 %v642, %v640
        %v693 = vpack.c.b16 %v643, %v641
        %v694 = vpack.c.b16 %v646, %v644
        %v695 = vpack.c.b16 %v647, %v645
        %v696 = vpack.c.b16 %v650, %v648
        %v697 = vpack.c.b16 %v651, %v649
        %v698 = vpack.c.b16 %v654, %v652
        %v699 = vpack.c.b16 %v655, %v653
        %v700 = vpack.c.b16 %v658, %v656
        %v701 = vpack.c.b16 %v659, %v657
        %v702 = vpack.c.b16 %v662, %v660
        %v703 = vpack.c.b16 %v663, %v661
        %v704 = vpack.c.b16 %v666, %v664
        %v705 = vpack.c.b16 %v667, %v665
        %v706 = vpack.c.b16 %v670, %v668
        %v707 = vpack.c.b16 %v671, %v669
        %v708 = vpack.c.b16 %v674, %v672
        %v709 = vpack.c.b16 %v675, %v673
        %v710 = vpack.c.b16 %v678, %v676
        %v711 = vpack.c.b16 %v679, %v677
        %744 = vmatprep.subr.bf16.mxu0 %v681
        %745 = vmatpush1.bf16.msra.mxu0 %v680
        %746 = vmatprep.subr.bf16.mxu0 %v683
        %747 = vmatpush1.bf16.msra.mxu0 %v682
        %748 = vmatprep.subr.bf16.mxu0 %v685
        %749 = vmatpush1.bf16.msra.mxu0 %v684
        %750 = vmatprep.subr.bf16.mxu0 %v687
        %751 = vmatpush1.bf16.msra.mxu0 %v686
        %752 = vmatprep.subr.bf16.mxu0 %v689
        %753 = vmatpush1.bf16.msra.mxu0 %v688
        %754 = vmatprep.subr.bf16.mxu0 %v691
        %755 = vmatpush1.bf16.msra.mxu0 %v690
        %756 = vmatprep.subr.bf16.mxu0 %v693
        %757 = vmatpush1.bf16.msra.mxu0 %v692
        %758 = vmatprep.subr.bf16.mxu0 %v695
        %759 = vmatpush1.bf16.msra.mxu0 %v694
        %760 = vmatprep.subr.bf16.mxu0 %v697
        %761 = vmatpush1.bf16.msra.mxu0 %v696
        %762 = vmatprep.subr.bf16.mxu0 %v699
        %763 = vmatpush1.bf16.msra.mxu0 %v698
        %764 = vmatprep.subr.bf16.mxu0 %v701
        %765 = vmatpush1.bf16.msra.mxu0 %v700
        %766 = vmatprep.subr.bf16.mxu0 %v703
        %767 = vmatpush1.bf16.msra.mxu0 %v702
        %768 = vmatprep.subr.bf16.mxu0 %v705
        %769 = vmatpush1.bf16.msra.mxu0 %v704
        %770 = vmatprep.subr.bf16.mxu0 %v707
        %771 = vmatpush1.bf16.msra.mxu0 %v706
        %772 = vmatprep.subr.bf16.mxu0 %v709
        %773 = vmatpush1.bf16.msra.mxu0 %v708
        %774 = vmatprep.subr.bf16.mxu0 %v711
        %775 = vmatpush1.bf16.msra.mxu0 %v710
        %776 = vmatprep.mubr.bf16.mxu0 %v551
        %777 = vmatmul.mubr.bf16.gmra.mrb[0].mxu0 %v550
        %v778 = vpop.f32.mrb[0].mxu0
        %v779 = vadd.f32 0.0, %v778
        %v780 = vpop.f32.mrb[0].mxu0
        %v781 = vadd.f32 0.0, %v780
        %v782 = vpop.f32.mrb[0].mxu0
        %v783 = vpop.f32.mrb[0].mxu0
        %784 = vdwg.mxu0
        %v785 = vrot.slane %v779, 4
        %v786 = vadd.f32 %v779, %v785
        %v787 = vrot.slane %v786, 2
        %v788 = vadd.f32 %v786, %v787
        %v789 = vrot.slane %v788, 1
        %v790 = vadd.f32 %v788, %v789
        %v791 = vrot.slane %v781, 4
        %v792 = vadd.f32 %v781, %v791
        %v793 = vrot.slane %v792, 2
        %v794 = vadd.f32 %v792, %v793
        %v795 = vrot.slane %v794, 1
        %v796 = vadd.f32 %v794, %v795
        %v797 = vmul.f32 %v779, %v779
        %v798 = vmul.f32 %v781, %v781
        %v799 = vrot.slane %v797, 4
        %v800 = vadd.f32 %v797, %v799
        %v801 = vrot.slane %v800, 2
        %v802 = vadd.f32 %v800, %v801
        %v803 = vrot.slane %v802, 1
        %v804 = vadd.f32 %v802, %v803
        %v805 = vrot.slane %v798, 4
        %v806 = vadd.f32 %v798, %v805
        %v807 = vrot.slane %v806, 2
        %v808 = vadd.f32 %v806, %v807
        %v809 = vrot.slane %v808, 1
        %v810 = vadd.f32 %v808, %v809
        %v811 = vmul.f32 %v790, 0.125
        %v812 = vmul.f32 %v796, 0.125
        %v813 = vmul.f32 %v804, 0.125
        %v814 = vmul.f32 %v810, 0.125
        %v815 = vmul.f32 %v811, %v811
        %v816 = vmul.f32 %v812, %v812
        %v817 = vsub.f32 %v813, %v815
        %v818 = vsub.f32 %v814, %v816
        %v819 = vadd.f32 %v817, 1e-05
        %v820 = vadd.f32 %v818, 1e-05
        %v821 = vrsqrt.pop %v819
        %v822 = vrsqrt.pop %v820
        %v825 = vcombine.low %v821, %v822
        %v827 = vunpack.c.l.s4 1966171168
        %v828 = vunpack.c.0.s8 %v827
        %v829 = vlaneseq
        %v830 = vshrl.u32 %v829, 7
        %v831 = vsub.s32 %v828, %v830
        %v832 = vrot.slane %v825, %v831
        %v834 = vunpack.c.l.s4 1966171168
        %v835 = vunpack.c.0.s8 %v834
        %v836 = vlaneseq
        %v837 = vshrl.u32 %v836, 7
        %v838 = vsub.s32 %v835, %v837
        %v839 = vrot.slane %v832, %v838
        %v841 = vmul.f32 %v301, %v839
        %v843 = vlaneseq
        %v844 = vshrl.u32 %v843, 7
        %v845 = vsub.s32 0, %v844
        %v846 = vrot.slane %v841, %v845
        %v847 = vlaneseq
        %v848 = vshrl.u32 %v847, 7
        %v849 = vsub.s32 1, %v848
        %v850 = vrot.slane %v841, %v849
        %v853 = vmul.f32 %v811, %v846
        %v854 = vmul.f32 %v812, %v850
        %v857 = vcombine.low %v853, %v854
        %v859 = vunpack.c.l.s4 1966171168
        %v860 = vunpack.c.0.s8 %v859
        %v861 = vlaneseq
        %v862 = vshrl.u32 %v861, 7
        %v863 = vsub.s32 %v860, %v862
        %v864 = vrot.slane %v857, %v863
        %v866 = vunpack.c.l.s4 1966171168
        %v867 = vunpack.c.0.s8 %v866
        %v868 = vlaneseq
        %v869 = vshrl.u32 %v868, 7
        %v870 = vsub.s32 %v867, %v869
        %v871 = vrot.slane %v864, %v870
        %v873 = vsub.f32 %v303, %v871
        %v874 = vmul.f32 %v779, %v846
        %v875 = vmul.f32 %v781, %v850
        %v877 = vlaneseq
        %v878 = vshrl.u32 %v877, 7
        %v879 = vsub.s32 0, %v878
        %v880 = vrot.slane %v873, %v879
        %v881 = vlaneseq
        %v882 = vshrl.u32 %v881, 7
        %v883 = vsub.s32 1, %v882
        %v884 = vrot.slane %v873, %v883
        %v887 = vadd.f32 %v874, %v880
        %v888 = vadd.f32 %v875, %v884
        %v889 = vmax.f32 %v887, 0.0
        %v890 = vmax.f32 %v888, 0.0
        %v891 = vpack.c.bf16 %v889, %v889
        %v892 = vpack.c.bf16 %v890, %v890
        %v893 = vld [vmem:[#allocation8] sm:$0xf]
        %v894 = vld [vmem:[#allocation8 + $0x4] sm:$0xf]
        %v895 = vld [vmem:[#allocation8 + $0x8] sm:$0xf]
        %v896 = vld [vmem:[#allocation8 + $0xc] sm:$0xf]
        %v897 = vld [vmem:[#allocation8 + $0x10] sm:$0xf]
        %v898 = vld [vmem:[#allocation8 + $0x14] sm:$0xf]
        %v899 = vld [vmem:[#allocation8 + $0x18] sm:$0xf]
        %v900 = vld [vmem:[#allocation8 + $0x1c] sm:$0xf]
        %v901 = vld [vmem:[#allocation8 + $0x20] sm:$0xf]
        %v902 = vld [vmem:[#allocation8 + $0x24] sm:$0xf]
        %v903 = vld [vmem:[#allocation8 + $0x28] sm:$0xf]
        %v904 = vld [vmem:[#allocation8 + $0x2c] sm:$0xf]
        %v905 = vld [vmem:[#allocation8 + $0x30] sm:$0xf]
        %v906 = vld [vmem:[#allocation8 + $0x34] sm:$0xf]
        %v907 = vld [vmem:[#allocation8 + $0x38] sm:$0xf]
        %v908 = vld [vmem:[#allocation8 + $0x3c] sm:$0xf]
        %v909 = vld [vmem:[#allocation8 + $0x40] sm:$0xf]
        %v910 = vld [vmem:[#allocation8 + $0x44] sm:$0xf]
        %v911 = vld [vmem:[#allocation8 + $0x48] sm:$0xf]
        %v912 = vld [vmem:[#allocation8 + $0x4c] sm:$0xf]
        %v913 = vld [vmem:[#allocation8 + $0x50] sm:$0xf]
        %v914 = vld [vmem:[#allocation8 + $0x54] sm:$0xf]
        %v915 = vld [vmem:[#allocation8 + $0x58] sm:$0xf]
        %v916 = vld [vmem:[#allocation8 + $0x5c] sm:$0xf]
        %v917 = vld [vmem:[#allocation8 + $0x60] sm:$0xf]
        %v918 = vld [vmem:[#allocation8 + $0x64] sm:$0xf]
        %v919 = vld [vmem:[#allocation8 + $0x68] sm:$0xf]
        %v920 = vld [vmem:[#allocation8 + $0x6c] sm:$0xf]
        %v921 = vld [vmem:[#allocation8 + $0x70] sm:$0xf]
        %v922 = vld [vmem:[#allocation8 + $0x74] sm:$0xf]
        %v923 = vld [vmem:[#allocation8 + $0x78] sm:$0xf]
        %v924 = vld [vmem:[#allocation8 + $0x7c] sm:$0xf]
        %v957 = vunpack.c.l.b16 %v893
        %v958 = vunpack.c.l.b16 %v894
        %v959 = vunpack.c.l.b16 %v895
        %v960 = vunpack.c.l.b16 %v896
        %v961 = vunpack.c.l.b16 %v897
        %v962 = vunpack.c.l.b16 %v898
        %v963 = vunpack.c.l.b16 %v899
        %v964 = vunpack.c.l.b16 %v900
        %v965 = vunpack.c.l.b16 %v901
        %v966 = vunpack.c.l.b16 %v902
        %v967 = vunpack.c.l.b16 %v903
        %v968 = vunpack.c.l.b16 %v904
        %v969 = vunpack.c.l.b16 %v905
        %v970 = vunpack.c.l.b16 %v906
        %v971 = vunpack.c.l.b16 %v907
        %v972 = vunpack.c.l.b16 %v908
        %v973 = vunpack.c.l.b16 %v909
        %v974 = vunpack.c.l.b16 %v910
        %v975 = vunpack.c.l.b16 %v911
        %v976 = vunpack.c.l.b16 %v912
        %v977 = vunpack.c.l.b16 %v913
        %v978 = vunpack.c.l.b16 %v914
        %v979 = vunpack.c.l.b16 %v915
        %v980 = vunpack.c.l.b16 %v916
        %v981 = vunpack.c.l.b16 %v917
        %v982 = vunpack.c.l.b16 %v918
        %v983 = vunpack.c.l.b16 %v919
        %v984 = vunpack.c.l.b16 %v920
        %v985 = vunpack.c.l.b16 %v921
        %v986 = vunpack.c.l.b16 %v922
        %v987 = vunpack.c.l.b16 %v923
        %v988 = vunpack.c.l.b16 %v924
        %v989 = vpack.c.b16 %v958, %v957
        %v990 = vpack.c.b16 %v960, %v959
        %v991 = vpack.c.b16 %v962, %v961
        %v992 = vpack.c.b16 %v964, %v963
        %v993 = vpack.c.b16 %v966, %v965
        %v994 = vpack.c.b16 %v968, %v967
        %v995 = vpack.c.b16 %v970, %v969
        %v996 = vpack.c.b16 %v972, %v971
        %v997 = vpack.c.b16 %v974, %v973
        %v998 = vpack.c.b16 %v976, %v975
        %v999 = vpack.c.b16 %v978, %v977
        %v1000 = vpack.c.b16 %v980, %v979
        %v1001 = vpack.c.b16 %v982, %v981
        %v1002 = vpack.c.b16 %v984, %v983
        %v1003 = vpack.c.b16 %v986, %v985
        %v1004 = vpack.c.b16 %v988, %v987
        %1021 = vmatprep.subr.bf16.mxu0 0
        %1022 = vmatpush1.bf16.msra.mxu0 %v989
        %1023 = vmatprep.subr.bf16.mxu0 0
        %1024 = vmatpush1.bf16.msra.mxu0 %v990
        %1025 = vmatprep.subr.bf16.mxu0 0
        %1026 = vmatpush1.bf16.msra.mxu0 %v991
        %1027 = vmatprep.subr.bf16.mxu0 0
        %1028 = vmatpush1.bf16.msra.mxu0 %v992
        %1029 = vmatprep.subr.bf16.mxu0 0
        %1030 = vmatpush1.bf16.msra.mxu0 %v993
        %1031 = vmatprep.subr.bf16.mxu0 0
        %1032 = vmatpush1.bf16.msra.mxu0 %v994
        %1033 = vmatprep.subr.bf16.mxu0 0
        %1034 = vmatpush1.bf16.msra.mxu0 %v995
        %1035 = vmatprep.subr.bf16.mxu0 0
        %1036 = vmatpush1.bf16.msra.mxu0 %v996
        %1037 = vmatprep.subr.bf16.mxu0 0
        %1038 = vmatpush1.bf16.msra.mxu0 %v997
        %1039 = vmatprep.subr.bf16.mxu0 0
        %1040 = vmatpush1.bf16.msra.mxu0 %v998
        %1041 = vmatprep.subr.bf16.mxu0 0
        %1042 = vmatpush1.bf16.msra.mxu0 %v999
        %1043 = vmatprep.subr.bf16.mxu0 0
        %1044 = vmatpush1.bf16.msra.mxu0 %v1000
        %1045 = vmatprep.subr.bf16.mxu0 0
        %1046 = vmatpush1.bf16.msra.mxu0 %v1001
        %1047 = vmatprep.subr.bf16.mxu0 0
        %1048 = vmatpush1.bf16.msra.mxu0 %v1002
        %1049 = vmatprep.subr.bf16.mxu0 0
        %1050 = vmatpush1.bf16.msra.mxu0 %v1003
        %1051 = vmatprep.subr.bf16.mxu0 0
        %1052 = vmatpush1.bf16.msra.mxu0 %v1004
        %1053 = vmatprep.mubr.bf16.mxu0 %v892
        %1054 = vmatmul.mubr.bf16.gmra.mrb[0].mxu0 %v891
        %v1055 = vpop.f32.mrb[0].mxu0
        %v1056 = vadd.f32 %v304, %v1055
        %v1057 = vpop.f32.mrb[0].mxu0
        %v1058 = vpop.f32.mrb[0].mxu0
        %v1059 = vpop.f32.mrb[0].mxu0
        %1060 = vdwg.mxu0
        %1061 = vst [vmem:[%s295] sm:$0xff] %v1056
        %s1062 = sand.u32 %s142, 1
        %s1063 = scalar_lea.sflag [#allocation4], %s1062
        %s1064 = sand.u32 %s142, 1
        %s1065 = smul.addr %s1064, 8
        %s1066 = scalar_lea.vmem [#allocation11], %s1065
        // Predicated region
        $region61: #{tpu_custom_call.1} parent=39 // pred_check
          %p1067 = pneg %p152
        $region62: #{tpu_custom_call.1} parent=39 // pred_check_branch
          %1069 = sbr.rel (%p1067) target = $region64
        $region63: #{tpu_custom_call.1} parent=39 // pred_region
          %s1071 = ssub.s32 128, 128
          %1072 = vsyncadd %s1063, %s1071
          %s1073 = smul.addr %s24, 128
          %s1074 = scalar_lea.hbm %s5, %s1073
          %s1076 = sshll.u32 %s1066, 4
          %s1077 = int_to_ptr.vmem [resolvable:$true] %s1076
          %1079 = dma.vmem_to_hbm [thread:$0]  %s1077, 128, %s1074, %s1063
        $region64: #{tpu_custom_call.1} parent=39 // pred_fallthru
          _
      $region40: #{tpu_custom_call.1} parent=5 // pred_fallthru
        _
      %p1080 = scmp.le.s32.totalorder 2, %s19
      // Predicated region
      $region65: #{tpu_custom_call.1} parent=5 // pred_check
        %p1081 = pneg %p1080
      $region66: #{tpu_custom_call.1} parent=5 // pred_check_branch
        %1083 = sbr.rel (%p1081) target = $region68
      $region67: #{tpu_custom_call.1} parent=5 // pred_region
        %s1084 = ssub.s32 %s19, 2
        // Predicated region
        $region69: #{tpu_custom_call.1} parent=67 // pred_check
          %p1085 = pneg %p158
        $region70: #{tpu_custom_call.1} parent=67 // pred_check_branch
          %1087 = sbr.rel (%p1085) target = $region72
        $region71: #{tpu_custom_call.1} parent=67 // pred_region
          %s1088 = sand.u32 %s143, 1
          %s1089 = scalar_lea.sflag [#allocation4], %s1088
          %s1090 = sand.u32 %s143, 1
          %s1091 = smul.addr %s1090, 8
          %s1092 = scalar_lea.vmem [#allocation11], %s1091
          %1093 = dma.done %s1089, 128
        $region72: #{tpu_custom_call.1} parent=67 // pred_fallthru
          _
      $region68: #{tpu_custom_call.1} parent=5 // pred_fallthru
        _
    $region6: #{tpu_custom_call.1} parent=1 // loop_footer
      %s23 = sadd.s32 1, %s19
    $region7: #{tpu_custom_call.1} parent=1 // loop_footer_branch
      %18 = sbr.rel target = $region3
    $region8: #{tpu_custom_call.1} parent=1 // loop_exit
      _
    %1094 = vsyncpa [#allocation3], 1
    %s1095 = scalar_lea.sflag [#allocation3], 1
    %1096 = vsyncpa %s1095, 1
    %1097 = vsyncpa [#allocation6], 1
    %1098 = vsyncpa [#allocation9], 1
    %1099 = vsyncpa [#allocation4], 1
    %s1100 = scalar_lea.sflag [#allocation4], 1
    %1101 = vsyncpa %s1100, 1

</llo_original>
